<compile_context>
chip_gen: v7x
topology: tpu7x:2x2x1
jax: 0.10.0
libtpu: 0.0.40
codegen_flags: <defaults>
</compile_context>

<pallas_src>
import jax
import jax.numpy as jnp
from jax.experimental import pallas as pl
from jax.experimental.pallas import tpu as pltpu


_MIB = 1024 * 1024


def _round_up(a, b):
    return (a + b - 1) // b * b


def _pick_tile(vp, target):
    """Largest multiple of 128 that divides `vp` and is <= target (min 128)."""
    t = max(128, (min(target, vp) // 128) * 128)
    while vp % t:
        t -= 128
    return t


def _working_set_bytes(bcp, vp, tn, tk, x_resident):
    """Pipelined VMEM working set (double-buffered inputs/outputs)."""
    gt_bytes = 2 * tk * tn * 2            # bf16 GT tile, double-buffered
    out_bytes = 2 * bcp * tn * 4          # f32 output block, double-buffered
    x_bytes = 2 * bcp * (vp if x_resident else tk) * 2
    return gt_bytes + out_bytes + x_bytes


def _make_kernel(tk, x_resident):
    """Kernel over grid (D, N, K): accumulate x @ GT[d] K-tiles into o_ref."""

    def kernel(x_ref, gt_ref, o_ref):
        # x_ref:  (BCp, Vp) bf16 resident field slab   (if x_resident)
        #         (BCp, tk) bf16 streamed K-tile        (otherwise)
        # gt_ref: (1, tk, tn) bf16 transposed, mask-folded operator tile
        # o_ref:  (BCp, tn)   f32 output block, resident across the K axis
        k = pl.program_id(2)

        @pl.when(k == 0)
        def _():
            o_ref[...] = jnp.zeros_like(o_ref)

        if x_resident:
            x_tile = x_ref[:, pl.ds(pl.multiple_of(k * tk, 128), tk)]
        else:
            x_tile = x_ref[...]
        o_ref[...] += jnp.dot(x_tile, gt_ref[0],
                              preferred_element_type=jnp.float32)

    return kernel


def prepare_gradient_operators(grad_ops, keep_mask, *, pad_to=512):
    """Fit-time preprocessing (done once, outside the forward hot path).

    Transposes G[d] so the kernel computes x @ GT[d], folds the pole mask into
    the output-vertex columns, pads V up to a multiple of the intended tile
    width, and casts to bf16.
    """
    assert pad_to % 128 == 0 and pad_to >= 128
    D, V, _ = grad_ops.shape
    gt = jnp.transpose(grad_ops, (0, 2, 1)) * keep_mask[None, None, :]
    Vp = _round_up(V, pad_to)
    if Vp != V:
        gt = jnp.pad(gt, ((0, 0), (0, Vp - V), (0, Vp - V)))
    return gt.astype(jnp.bfloat16)                               # [D, Vp, Vp]


def fenics_gradient_forward(x, gt, *, tile_n=2048, tile_k=2048,
                            vmem_budget_bytes=32 * _MIB):
    """Apply the (preprocessed) mesh gradient operators to a vertex field.

    Args:
      x:  [B, C, V] float32 vertex fields.
      gt: [D, Vp, Vp] bfloat16 operators from `prepare_gradient_operators`
          (transposed, pole-mask folded in, V padded to a multiple of 128).
      tile_n / tile_k: target output/reduction tile widths (multiples of 128).
      vmem_budget_bytes: cap on the pipelined VMEM working set (conservative
          default that fits all of v5e / v6e / v7x).

    Returns:
      [B, C, D, V] float32 gradients, zeroed on masked (pole) vertices.
    """
    B, C, V = x.shape
    D, Vp, _ = gt.shape
    BC = B * C
    BCp = _round_up(BC, 16)          # bf16 sublane packing

    x2 = x.reshape(BC, V).astype(jnp.bfloat16)
    if BCp != BC or Vp != V:
        x2 = jnp.pad(x2, ((0, BCp - BC), (0, Vp - V)))

    tn = _pick_tile(Vp, tile_n)
    tk = _pick_tile(Vp, tile_k)

    # Keep x resident in VMEM when it fits comfortably within the budget;
    # otherwise fall back to streaming K-tiles of x.
    x_resident = 2 * BCp * Vp * 2 <= vmem_budget_bytes // 2
    # Shrink the larger tile until the double-buffered working set fits.
    while (_working_set_bytes(BCp, Vp, tn, tk, x_resident) > vmem_budget_bytes
           and (tn > 128 or tk > 128)):
        if tk >= tn and tk > 128:
            tk = _pick_tile(Vp, tk - 128)
        else:
            tn = _pick_tile(Vp, tn - 128)

    ws = _working_set_bytes(BCp, Vp, tn, tk, x_resident)
    vmem_limit = min(max(32 * _MIB, ws + 16 * _MIB), 56 * _MIB)

    nt = Vp // tn                      # output tiles per gradient order

    if x_resident:
        x_spec = pl.BlockSpec((BCp, Vp), lambda d, n, k: (0, 0))
    else:
        x_spec = pl.BlockSpec((BCp, tk), lambda d, n, k: (0, k))

    out = pl.pallas_call(
        _make_kernel(tk, x_resident),
        out_shape=jax.ShapeDtypeStruct((BCp, D * Vp), jnp.float32),
        grid_spec=pltpu.PrefetchScalarGridSpec(
            num_scalar_prefetch=0,
            grid=(D, nt, Vp // tk),
            in_specs=[
                x_spec,                                             # x
                pl.BlockSpec((1, tk, tn), lambda d, n, k: (d, k, n)),  # GT[d]
            ],
            # Transpose-free layout: order d occupies columns [d*Vp, (d+1)*Vp).
            out_specs=pl.BlockSpec((BCp, tn),
                                   lambda d, n, k: (0, d * nt + n)),
        ),
        compiler_params=pltpu.CompilerParams(
            dimension_semantics=("parallel", "parallel", "arbitrary"),
            vmem_limit_bytes=vmem_limit),
    )(x2, gt)

    # [BCp, D*Vp] -> [B, C, D, V] with a free reshape (no HBM transpose pass).
    return out[:BC].reshape(B, C, D, Vp)[..., :V]


def build_synthetic_operators(V, D=3, cutoff=0.1, pixel_scale=0.2619):
    """Deterministic stand-ins for the assembled FEniCS gradient operators."""
    idx = jnp.arange(V)
    ops = []
    for d in range(D):
        shift = d + 1
        # Circulant central-difference-like operator, scaled by pixel_scale.
        fwd = (idx[:, None] == ((idx + shift) % V)[None, :]).astype(jnp.float32)
        bwd = (idx[:, None] == ((idx - shift) % V)[None, :]).astype(jnp.float32)
        ops.append((fwd - bwd) / (2.0 * shift * pixel_scale))
    grad_ops = jnp.stack(ops, axis=0)                             # [D, V, V]

    # Tangent-space z coordinate and pole mask (mask=True -> dropped vertex).
    z_emb = jnp.linspace(0.0, 1.0, V)
    mask = (z_emb <= cutoff) | (z_emb >= 1.0 - cutoff)
    keep_mask = jnp.where(mask, 0.0, 1.0).astype(jnp.float32)     # [V]
    return grad_ops, keep_mask


if __name__ == "__main__":
    B, C, V, D = 2, 4, 256, 3   # batch, channels, mesh vertices, grad orders
    key = jax.random.PRNGKey(0)
    x = jax.random.normal(key, (B, C, V), dtype=jnp.float32)

    # "fit": assemble operators + mask, then hoist transpose / mask-folding /
    # bf16 cast / tile-aligned padding (V=256 -> Vp=512 exercises padding).
    grad_ops, keep_mask = build_synthetic_operators(V, D=D, cutoff=0.1)
    gt = prepare_gradient_operators(grad_ops, keep_mask, pad_to=512)

    out = fenics_gradient_forward(x, gt)
    out = jax.block_until_ready(out)

    # Independent reference built from the ORIGINAL operators + mask
    # (out = keep * (G[d] @ x)), using the same bf16 quantization of both
    # operands so the mask-folding / transpose / padding in `prepare` is
    # actually validated against the PyTorch semantics.
    masked_g = grad_ops * keep_mask[None, :, None]                # mask output rows
    g_q = masked_g.astype(jnp.bfloat16).astype(jnp.float32)
    x_q = x.astype(jnp.bfloat16).astype(jnp.float32)
    ref = jnp.einsum('bcv,dnv->bcdn', x_q, g_q,
                     precision=jax.lax.Precision.HIGHEST)

    assert out.shape == (B, C, D, V)
    max_err = float(jnp.max(jnp.abs(out - ref)))
    assert jnp.allclose(out, ref, atol=5e-3, rtol=5e-3), max_err
    print("KERNEL_OK")
</pallas_src>

<mosaic_0001>
module attributes {stable_mosaic.version = 11 : i64} {
  func.func @kernel(%arg0: i32, %arg1: i32, %arg2: i32, %arg3: memref<16x512xbf16, #tpu.memory_space<vmem>>, %arg4: memref<1x512x512xbf16, #tpu.memory_space<vmem>>, %arg5: memref<16x512xf32, #tpu.memory_space<vmem>>) attributes {dimension_semantics = [#tpu.dimension_semantics<parallel>, #tpu.dimension_semantics<parallel>, #tpu.dimension_semantics<arbitrary>], iteration_bounds = array<i64: 3, 1, 1>, scalar_prefetch = 0 : i64, scratch_operands = 0 : i64, tpu.core_type = #tpu.core_type<tc>, window_params = [{pipeline_mode = #tpu.pipeline_mode<synchronous>, transform_indices = @transform_0, window_bounds = array<i64: 16, 512>}, {transform_indices = @transform_1, window_bounds = array<i64: 1, 512, 512>}, {transform_indices = @transform_2, window_bounds = array<i64: 16, 512>}]} {
    %c0_i32 = arith.constant 0 : i32
    %0 = arith.cmpi eq, %arg2, %c0_i32 : i32
    %1 = arith.extui %0 : i1 to i32
    %c0_i32_0 = arith.constant 0 : i32
    %2 = arith.cmpi ne, %1, %c0_i32_0 : i32
    scf.if %2 {
      %cst_8 = arith.constant 0.000000e+00 : f32
      %13 = vector.broadcast %cst_8 : f32 to vector<16x512xf32>
      %c0_9 = arith.constant 0 : index
      %c0_10 = arith.constant 0 : index
      %14 = vector.load %arg5[%c0_9, %c0_10] : memref<16x512xf32, #tpu.memory_space<vmem>>, vector<16x512xf32>
      tpu.vector_store %arg5[%c0_9, %c0_10], %13 {strides = array<i32>} : memref<16x512xf32, #tpu.memory_space<vmem>>, vector<16x512xf32>,
    } else {
    }
    %c512_i32 = arith.constant 512 : i32
    %3 = arith.muli %arg2, %c512_i32 : i32
    %4 = tpu.assume_multiple %3, 128 : i32
    %c0 = arith.constant 0 : index
    %5 = arith.index_cast %4 : i32 to index
    %6 = vector.load %arg3[%c0, %5] : memref<16x512xbf16, #tpu.memory_space<vmem>>, vector<16x512xbf16>
    %c0_1 = arith.constant 0 : index
    %c0_2 = arith.constant 0 : index
    %7 = vector.load %arg5[%c0_1, %c0_2] : memref<16x512xf32, #tpu.memory_space<vmem>>, vector<16x512xf32>
    %c0_3 = arith.constant 0 : index
    %c0_4 = arith.constant 0 : index
    %c0_5 = arith.constant 0 : index
    %8 = vector.load %arg4[%c0_3, %c0_4, %c0_5] : memref<1x512x512xbf16, #tpu.memory_space<vmem>>, vector<1x512x512xbf16>
    %9 = vector.shape_cast %8 : vector<1x512x512xbf16> to vector<512x512xbf16>
    %cst = arith.constant dense<0.000000e+00> : vector<16x512xf32>
    %10 = tpu.matmul %6, %9, %cst {dimension_numbers = #tpu.dot_dimension_numbers<[1], [0], [0], [1], [0, 0, 1, 1], [], []>} : vector<16x512xbf16>, vector<512x512xbf16>, vector<16x512xf32> -> vector<16x512xf32>
    %11 = arith.addf %7, %10 : vector<16x512xf32>
    %c0_6 = arith.constant 0 : index
    %c0_7 = arith.constant 0 : index
    %12 = vector.load %arg5[%c0_6, %c0_7] : memref<16x512xf32, #tpu.memory_space<vmem>>, vector<16x512xf32>
    tpu.vector_store %arg5[%c0_6, %c0_7], %11 {strides = array<i32>} : memref<16x512xf32, #tpu.memory_space<vmem>>, vector<16x512xf32>,
    return
  }
  func.func @transform_0(%arg0: i32, %arg1: i32, %arg2: i32) -> (i32, i32) {
    %c0_i32 = arith.constant 0 : i32
    %c0_i32_0 = arith.constant 0 : i32
    %c0_i32_1 = arith.constant 0 : i32
    return %c0_i32, %c0_i32_0 : i32, i32
  }
  func.func @transform_1(%arg0: i32, %arg1: i32, %arg2: i32) -> (i32, i32, i32) {
    %c0_i32 = arith.constant 0 : i32
    return %arg0, %arg2, %arg1 : i32, i32, i32
  }
  func.func @transform_2(%arg0: i32, %arg1: i32, %arg2: i32) -> (i32, i32) {
    %c1_i32 = arith.constant 1 : i32
    %0 = arith.muli %arg0, %c1_i32 : i32
    %1 = arith.addi %0, %arg1 : i32
    %c0_i32 = arith.constant 0 : i32
    %c0_i32_0 = arith.constant 0 : i32
    return %c0_i32, %1 : i32, i32
  }
}

</mosaic_0001>

<llo_original>
// kernel: tpu_custom_call.1
$region0: #{tpu_custom_call.1}
  #allocation0 [shape = 'u32[]', space=smem, size = 0x4, offset = 0x4, fixed_abs, tag = 'smem constant byte address 0x4 - core index']
  #allocation1 [shape = 'u32[144,128]{1,0:T(1,128)}', space=vmem, size = 0x12000, scoped, tag = 'internal scratch']
  %s0 = inlined_call_operand.hbm [shape: bf16[16,512], index: 0, kind: input, shape index: {}]
  %s1 = inlined_call_operand.hbm [shape: bf16[3,512,512], index: 1, kind: input, shape index: {}]
  %s2 = inlined_call_operand.hbm [shape: f32[16,1536], index: 2, kind: output, shape index: {}]
  %s3 = sld [smem:[#allocation0]]
  $region53: #{tpu_custom_call.1} parent=0
    _
  %s5 = ssub.s32 1, %s3
  %s6 = scalar_select 0, %s5, %s3
  $region1: #{tpu_custom_call.1} parent=0
    #allocation2 [shape = 'u8[16384]{0}', space=vmem, size = 0x4000, scoped, tag = 'input window, operand 0, single buffered']
    #allocation3 [shape = 's32[2]{0}', space=sflag, size = 0x8, scoped, tag = 'scoped memory for tpu_custom_call.1']
    #allocation4 [shape = 's32[2]{0}', space=sflag, size = 0x8, scoped, tag = 'scoped memory for tpu_custom_call.1']
    #allocation5 [shape = 'u8[1048576]{0}', space=vmem, size = 0x100000, scoped, tag = 'input window, operand 1']
    #allocation6 [shape = 's32[2]{0}', space=sflag, size = 0x8, scoped, tag = 'scoped memory for tpu_custom_call.1']
    #allocation7 [shape = 'u8[65536]{0}', space=vmem, size = 0x10000, scoped, tag = 'output window, operand 0']
    %7 = vsyncpa [#allocation3], 0
    %8 = vsyncpa [#allocation6], 0
    %s9 = scalar_lea.sflag [#allocation6], 1
    %10 = vsyncpa %s9, 0
    %11 = vsyncpa [#allocation4], 0
    %s12 = scalar_lea.sflag [#allocation4], 1
    %13 = vsyncpa %s12, 0
    loop: start=0, step=1, limit=5
    $region2: #{tpu_custom_call.1} parent=1 // loop_pre_header
      _
    $region3: #{tpu_custom_call.1} parent=1 // loop_header
      %s15 = sphi 0, %s19
      %p16 = scmp.ge.s32.totalorder %s15, 5
      %s22 = sphi 0, %s41
      %s23 = sphi 0, %s37
      %s24 = sphi 0, %s33
      %s25 = sphi 0, %s22
      %s26 = sphi 0, %s23
      %s27 = sphi 0, %s24
      %s28 = sphi 0, %s25
      %s29 = sphi 0, %s26
      %s30 = sphi 0, %s27
      %s42 = sphi 0, %s42
      %s44 = sphi 0, %s42
      %s45 = sphi 0, %s44
      %s59 = sphi 0, %s45
      %s69 = sphi 0, %s71
      %s72 = sphi 0, %s69
      %s73 = sphi 0, %s72
      %s89 = sphi 0, %s73
      %s97 = sphi 0, %s99
      %s100 = sphi 0, %s97
      %s101 = sphi 0, %s100
      %s117 = sphi 0, %s101
    $region4: #{tpu_custom_call.1} parent=1 // loop_header_branch
      %18 = sbr.rel (%p16) target = $region8
    $region5: #{tpu_custom_call.1} parent=1 // loop_body
      %s20 = ssub.s32 %s15, 1
      %s21 = ssub.s32 %s15, 2
      %s31 = sadd.s32 1, %s24
      %p32 = scmp.ge.s32.totalorder %s31, 1
      %s33 = scalar_select %p32, 0, %s31
      %s34 = sadd.s32 1, %s23
      %s35 = scalar_select %p32, %s34, %s23
      %p36 = scmp.ge.s32.totalorder %s35, 1
      %s37 = scalar_select %p36, 0, %s35
      %s38 = sadd.s32 1, %s22
      %s39 = scalar_select %p36, %s38, %s22
      %p40 = scmp.ge.s32.totalorder %s39, 3
      %s41 = scalar_select %p40, 0, %s39
      %s43 = sadd.s32 %s42, 1
      %p46 = scmp.eq.s32.totalorder %s15, 2
      %p47 = scmp.ne.s32.totalorder %s42, %s44
      %p48 = scmp.eq.s32.totalorder %s15, 0
      %p49 = por %p47, %p48
      %p50 = scmp.ne.s32.totalorder %s42, %s44
      %p51 = scmp.eq.s32.totalorder %s20, 2
      %p52 = por %p50, %p51
      %p53 = scmp.ne.s32.totalorder %s44, %s45
      %p54 = scmp.eq.s32.totalorder %s20, 0
      %p55 = por %p53, %p54
      %p56 = scmp.ne.s32.totalorder %s44, %s45
      %p57 = scmp.eq.s32.totalorder %s21, 2
      %p58 = por %p56, %p57
      %p60 = scmp.ne.s32.totalorder %s45, %s59
      %p61 = scmp.eq.s32.totalorder %s21, 0
      %p62 = por %p60, %p61
      %s63 = ssub.s32 %s22, %s41
      %s64 = ssub.s32 %s24, %s33
      %s65 = sor.u32 %s63, %s64
      %s66 = ssub.s32 %s23, %s37
      %s67 = sor.u32 %s65, %s66
      %p68 = scmp.eq.s32.totalorder %s67, 0
      %s70 = sadd.s32 %s69, 1
      %s71 = scalar_select %p68, %s69, %s70
      %p74 = pneg %p68
      %p75 = scmp.eq.s32.totalorder %s15, 2
      %p76 = por %p74, %p75
      %p77 = scmp.ne.s32.totalorder %s69, %s72
      %p78 = scmp.eq.s32.totalorder %s15, 0
      %p79 = por %p77, %p78
      %p80 = scmp.ne.s32.totalorder %s69, %s72
      %p81 = scmp.eq.s32.totalorder %s20, 2
      %p82 = por %p80, %p81
      %p83 = scmp.ne.s32.totalorder %s72, %s73
      %p84 = scmp.eq.s32.totalorder %s20, 0
      %p85 = por %p83, %p84
      %p86 = scmp.ne.s32.totalorder %s72, %s73
      %p87 = scmp.eq.s32.totalorder %s21, 2
      %p88 = por %p86, %p87
      %p90 = scmp.ne.s32.totalorder %s73, %s89
      %p91 = scmp.eq.s32.totalorder %s21, 0
      %p92 = por %p90, %p91
      %s93 = sadd.s32 %s22, %s23
      %s94 = sadd.s32 %s41, %s37
      %s95 = ssub.s32 %s93, %s94
      %p96 = scmp.eq.s32.totalorder %s95, 0
      %s98 = sadd.s32 %s97, 1
      %s99 = scalar_select %p96, %s97, %s98
      %p102 = pneg %p96
      %p103 = scmp.eq.s32.totalorder %s15, 2
      %p104 = por %p102, %p103
      %p105 = scmp.ne.s32.totalorder %s97, %s100
      %p106 = scmp.eq.s32.totalorder %s15, 0
      %p107 = por %p105, %p106
      %p108 = scmp.ne.s32.totalorder %s97, %s100
      %p109 = scmp.eq.s32.totalorder %s20, 2
      %p110 = por %p108, %p109
      %p111 = scmp.ne.s32.totalorder %s100, %s101
      %p112 = scmp.eq.s32.totalorder %s20, 0
      %p113 = por %p111, %p112
      %p114 = scmp.ne.s32.totalorder %s100, %s101
      %p115 = scmp.eq.s32.totalorder %s21, 2
      %p116 = por %p114, %p115
      %p118 = scmp.ne.s32.totalorder %s101, %s117
      %p119 = scmp.eq.s32.totalorder %s21, 0
      %p120 = por %p118, %p119
      %p121 = scmp.le.s32.totalorder 1, %s15
      %p122 = scmp.lt.s32.totalorder %s15, 4
      %p123 = pnand %p121, %p122
      %p124 = pneg %p123
      // Predicated region
      $region9: #{tpu_custom_call.1} parent=5 // pred_check
        _
      $region10: #{tpu_custom_call.1} parent=5 // pred_check_branch
        %126 = sbr.rel (%p123) target = $region12
      $region11: #{tpu_custom_call.1} parent=5 // pred_region
        %s127 = ssub.s32 %s15, 1
        // Predicated region
        $region13: #{tpu_custom_call.1} parent=11 // pred_check
          %p128 = pneg %p55
        $region14: #{tpu_custom_call.1} parent=11 // pred_check_branch
          %130 = sbr.rel (%p128) target = $region16
        $region15: #{tpu_custom_call.1} parent=11 // pred_region
          %s132 = ssub.s32 512, 512
          %133 = vsyncadd [#allocation3], %s132
          %s134 = sshll.u32 [#allocation2], 4
          %s135 = int_to_ptr.vmem [resolvable:$true] %s134
          %140 = dma.hbm_to_vmem [thread:$0]  %s0, 512, %s135, [#allocation3], 256, 256, 16
        $region16: #{tpu_custom_call.1} parent=11 // pred_fallthru
          _
      $region12: #{tpu_custom_call.1} parent=5 // pred_fallthru
        _
      %p141 = scmp.lt.s32.totalorder %s15, 3
      // Predicated region
      $region17: #{tpu_custom_call.1} parent=5 // pred_check
        %p142 = pneg %p141
      $region18: #{tpu_custom_call.1} parent=5 // pred_check_branch
        %144 = sbr.rel (%p142) target = $region20
      $region19: #{tpu_custom_call.1} parent=5 // pred_region
        // Predicated region
        $region21: #{tpu_custom_call.1} parent=19 // pred_check
          %p145 = pneg %p79
        $region22: #{tpu_custom_call.1} parent=19 // pred_check_branch
          %147 = sbr.rel (%p145) target = $region24
        $region23: #{tpu_custom_call.1} parent=19 // pred_region
          %s148 = sand.u32 %s69, 1
          %s149 = scalar_lea.sflag [#allocation6], %s148
          %s150 = sand.u32 %s69, 1
          %s151 = smul.addr %s150, 1024
          %s152 = scalar_lea.vmem [#allocation5], %s151
          %s153 = smul.u32 64, %s24
          %s154 = smul.u32 4, %s23
          %s156 = ssub.s32 16384, 16384
          %157 = vsyncadd %s149, %s156
          %s158 = smul.addr %s153, 4
          %s159 = sadd.s32 %s154, %s158
          %s160 = smul.addr %s22, 256
          %s161 = sadd.s32 %s159, %s160
          %s162 = smul.addr %s161, 64
          %s163 = scalar_lea.hbm %s1, %s162
          %s164 = sshll.u32 %s152, 4
          %s165 = int_to_ptr.vmem [resolvable:$true] %s164
          %170 = dma.hbm_to_vmem [thread:$0]  %s163, 16384, %s165, %s149, 256, 256, 16
        $region24: #{tpu_custom_call.1} parent=19 // pred_fallthru
          _
      $region20: #{tpu_custom_call.1} parent=5 // pred_fallthru
        _
      %p171 = scmp.le.s32.totalorder 1, %s15
      %p172 = scmp.lt.s32.totalorder %s15, 4
      %p173 = pnand %p171, %p172
      %p174 = pneg %p173
      // Predicated region
      $region25: #{tpu_custom_call.1} parent=5 // pred_check
        _
      $region26: #{tpu_custom_call.1} parent=5 // pred_check_branch
        %176 = sbr.rel (%p173) target = $region28
      $region27: #{tpu_custom_call.1} parent=5 // pred_region
        %s177 = ssub.s32 %s15, 1
        // Predicated region
        $region29: #{tpu_custom_call.1} parent=27 // pred_check
          %p178 = pneg %p55
        $region30: #{tpu_custom_call.1} parent=27 // pred_check_branch
          %180 = sbr.rel (%p178) target = $region32
        $region31: #{tpu_custom_call.1} parent=27 // pred_region
          %181 = dma.done [#allocation3], 512
        $region32: #{tpu_custom_call.1} parent=27 // pred_fallthru
          _
        %s182 = sand.u32 %s72, 1
        %s183 = scalar_lea.sflag [#allocation6], %s182
        %s184 = sand.u32 %s72, 1
        %s185 = smul.addr %s184, 1024
        %s186 = scalar_lea.vmem [#allocation5], %s185
        // Predicated region
        $region33: #{tpu_custom_call.1} parent=27 // pred_check
          %p187 = pneg %p85
        $region34: #{tpu_custom_call.1} parent=27 // pred_check_branch
          %189 = sbr.rel (%p187) target = $region36
        $region35: #{tpu_custom_call.1} parent=27 // pred_region
          %190 = dma.done %s183, 16384
        $region36: #{tpu_custom_call.1} parent=27 // pred_fallthru
          _
        %p191 = pneg %p55
        %p192 = pneg %p52
        %s193 = sand.u32 %s72, 1
        %s194 = scalar_lea.sflag [#allocation6], %s193
        %s195 = sand.u32 %s72, 1
        %s196 = smul.addr %s195, 1024
        %s197 = scalar_lea.vmem [#allocation5], %s196
        %p198 = pneg %p85
        %p199 = pneg %p82
        %p200 = pneg %p113
        %p201 = pneg %p110
        %s202 = sand.u32 %s100, 1
        %s203 = scalar_lea.sflag [#allocation4], %s202
        %s204 = sand.u32 %s100, 1
        %s205 = smul.addr %s204, 64
        %s206 = scalar_lea.vmem [#allocation7], %s205
        %s207 = smul.u32 64, %s27
        %s208 = smul.u32 4, %s26
        %s209 = sadd.s32 %s25, %s26
        %s210 = smul.u32 4, %s209
        %p211 = scmp.eq.s32.totalorder %s27, 0
        // Predicated region
        $region37: #{tpu_custom_call.1} parent=27 // pred_check
          %p212 = pneg %p211
        $region38: #{tpu_custom_call.1} parent=27 // pred_check_branch
          %214 = sbr.rel (%p212) target = $region40
        $region39: #{tpu_custom_call.1} parent=27 // pred_region
          %215 = vst [vmem:[%s206] sm:$0xff] 0.0
          %216 = vst [vmem:[%s206 + $0x8] sm:$0xff] 0.0
          %217 = vst [vmem:[%s206 + $0x10] sm:$0xff] 0.0
          %218 = vst [vmem:[%s206 + $0x18] sm:$0xff] 0.0
          %219 = vst [vmem:[%s206 + $0x20] sm:$0xff] 0.0
          %220 = vst [vmem:[%s206 + $0x28] sm:$0xff] 0.0
          %221 = vst [vmem:[%s206 + $0x30] sm:$0xff] 0.0
          %222 = vst [vmem:[%s206 + $0x38] sm:$0xff] 0.0
        $region40: #{tpu_custom_call.1} parent=27 // pred_fallthru
          _
        %s223 = smul.u32 %s27, 512
        %s224 = sshra.s32 %s223, 7
        %s225 = sand.u32 %s223, 127
        %s226 = smul.addr %s224, 4
        %s227 = scalar_lea.vmem [#allocation2], %s226
        %v228 = vld [vmem:[%s227] sm:$0xff]
        %v229 = vld [vmem:[%s227 + $0x8] sm:$0xff]
        %v230 = vld [vmem:[%s227 + $0x10] sm:$0xff]
        %v231 = vld [vmem:[%s227 + $0x18] sm:$0xff]
        %v232 = vld [vmem:[%s206] sm:$0xff]
        %v233 = vld [vmem:[%s206 + $0x8] sm:$0xff]
        %v234 = vld [vmem:[%s206 + $0x10] sm:$0xff]
        %v235 = vld [vmem:[%s206 + $0x18] sm:$0xff]
        %v236 = vld [vmem:[%s206 + $0x20] sm:$0xff]
        %v237 = vld [vmem:[%s206 + $0x28] sm:$0xff]
        %v238 = vld [vmem:[%s206 + $0x30] sm:$0xff]
        %v239 = vld [vmem:[%s206 + $0x38] sm:$0xff]
        %v240 = vld [vmem:[%s186] sm:$0xff]
        %v241 = vld [vmem:[%s186 + $0x8] sm:$0xff]
        %v242 = vld [vmem:[%s186 + $0x10] sm:$0xff]
        %v243 = vld [vmem:[%s186 + $0x18] sm:$0xff]
        %v244 = vld [vmem:[%s186 + $0x20] sm:$0xff]
        %v245 = vld [vmem:[%s186 + $0x28] sm:$0xff]
        %v246 = vld [vmem:[%s186 + $0x30] sm:$0xff]
        %v247 = vld [vmem:[%s186 + $0x38] sm:$0xff]
        %v248 = vld [vmem:[%s186 + $0x40] sm:$0xff]
        %v249 = vld [vmem:[%s186 + $0x48] sm:$0xff]
        %v250 = vld [vmem:[%s186 + $0x50] sm:$0xff]
        %v251 = vld [vmem:[%s186 + $0x58] sm:$0xff]
        %v252 = vld [vmem:[%s186 + $0x60] sm:$0xff]
        %v253 = vld [vmem:[%s186 + $0x68] sm:$0xff]
        %v254 = vld [vmem:[%s186 + $0x70] sm:$0xff]
        %v255 = vld [vmem:[%s186 + $0x78] sm:$0xff]
        %v256 = vld [vmem:[%s186 + $0x80] sm:$0xff]
        %v257 = vld [vmem:[%s186 + $0x88] sm:$0xff]
        %v258 = vld [vmem:[%s186 + $0x90] sm:$0xff]
        %v259 = vld [vmem:[%s186 + $0x98] sm:$0xff]
        %v260 = vld [vmem:[%s186 + $0xa0] sm:$0xff]
        %v261 = vld [vmem:[%s186 + $0xa8] sm:$0xff]
        %v262 = vld [vmem:[%s186 + $0xb0] sm:$0xff]
        %v263 = vld [vmem:[%s186 + $0xb8] sm:$0xff]
        %v264 = vld [vmem:[%s186 + $0xc0] sm:$0xff]
        %v265 = vld [vmem:[%s186 + $0xc8] sm:$0xff]
        %v266 = vld [vmem:[%s186 + $0xd0] sm:$0xff]
        %v267 = vld [vmem:[%s186 + $0xd8] sm:$0xff]
        %v268 = vld [vmem:[%s186 + $0xe0] sm:$0xff]
        %v269 = vld [vmem:[%s186 + $0xe8] sm:$0xff]
        %v270 = vld [vmem:[%s186 + $0xf0] sm:$0xff]
        %v271 = vld [vmem:[%s186 + $0xf8] sm:$0xff]
        %v272 = vld [vmem:[%s186 + $0x100] sm:$0xff]
        %v273 = vld [vmem:[%s186 + $0x108] sm:$0xff]
        %v274 = vld [vmem:[%s186 + $0x110] sm:$0xff]
        %v275 = vld [vmem:[%s186 + $0x118] sm:$0xff]
        %v276 = vld [vmem:[%s186 + $0x120] sm:$0xff]
        %v277 = vld [vmem:[%s186 + $0x128] sm:$0xff]
        %v278 = vld [vmem:[%s186 + $0x130] sm:$0xff]
        %v279 = vld [vmem:[%s186 + $0x138] sm:$0xff]
        %v280 = vld [vmem:[%s186 + $0x140] sm:$0xff]
        %v281 = vld [vmem:[%s186 + $0x148] sm:$0xff]
        %v282 = vld [vmem:[%s186 + $0x150] sm:$0xff]
        %v283 = vld [vmem:[%s186 + $0x158] sm:$0xff]
        %v284 = vld [vmem:[%s186 + $0x160] sm:$0xff]
        %v285 = vld [vmem:[%s186 + $0x168] sm:$0xff]
        %v286 = vld [vmem:[%s186 + $0x170] sm:$0xff]
        %v287 = vld [vmem:[%s186 + $0x178] sm:$0xff]
        %v288 = vld [vmem:[%s186 + $0x180] sm:$0xff]
        %v289 = vld [vmem:[%s186 + $0x188] sm:$0xff]
        %v290 = vld [vmem:[%s186 + $0x190] sm:$0xff]
        %v291 = vld [vmem:[%s186 + $0x198] sm:$0xff]
        %v292 = vld [vmem:[%s186 + $0x1a0] sm:$0xff]
        %v293 = vld [vmem:[%s186 + $0x1a8] sm:$0xff]
        %v294 = vld [vmem:[%s186 + $0x1b0] sm:$0xff]
        %v295 = vld [vmem:[%s186 + $0x1b8] sm:$0xff]
        %v296 = vld [vmem:[%s186 + $0x1c0] sm:$0xff]
        %v297 = vld [vmem:[%s186 + $0x1c8] sm:$0xff]
        %v298 = vld [vmem:[%s186 + $0x1d0] sm:$0xff]
        %v299 = vld [vmem:[%s186 + $0x1d8] sm:$0xff]
        %v300 = vld [vmem:[%s186 + $0x1e0] sm:$0xff]
        %v301 = vld [vmem:[%s186 + $0x1e8] sm:$0xff]
        %v302 = vld [vmem:[%s186 + $0x1f0] sm:$0xff]
        %v303 = vld [vmem:[%s186 + $0x1f8] sm:$0xff]
        %v304 = vld [vmem:[%s186 + $0x200] sm:$0xff]
        %v305 = vld [vmem:[%s186 + $0x208] sm:$0xff]
        %v306 = vld [vmem:[%s186 + $0x210] sm:$0xff]
        %v307 = vld [vmem:[%s186 + $0x218] sm:$0xff]
        %v308 = vld [vmem:[%s186 + $0x220] sm:$0xff]
        %v309 = vld [vmem:[%s186 + $0x228] sm:$0xff]
        %v310 = vld [vmem:[%s186 + $0x230] sm:$0xff]
        %v311 = vld [vmem:[%s186 + $0x238] sm:$0xff]
        %v312 = vld [vmem:[%s186 + $0x240] sm:$0xff]
        %v313 = vld [vmem:[%s186 + $0x248] sm:$0xff]
        %v314 = vld [vmem:[%s186 + $0x250] sm:$0xff]
        %v315 = vld [vmem:[%s186 + $0x258] sm:$0xff]
        %v316 = vld [vmem:[%s186 + $0x260] sm:$0xff]
        %v317 = vld [vmem:[%s186 + $0x268] sm:$0xff]
        %v318 = vld [vmem:[%s186 + $0x270] sm:$0xff]
        %v319 = vld [vmem:[%s186 + $0x278] sm:$0xff]
        %v320 = vld [vmem:[%s186 + $0x280] sm:$0xff]
        %v321 = vld [vmem:[%s186 + $0x288] sm:$0xff]
        %v322 = vld [vmem:[%s186 + $0x290] sm:$0xff]
        %v323 = vld [vmem:[%s186 + $0x298] sm:$0xff]
        %v324 = vld [vmem:[%s186 + $0x2a0] sm:$0xff]
        %v325 = vld [vmem:[%s186 + $0x2a8] sm:$0xff]
        %v326 = vld [vmem:[%s186 + $0x2b0] sm:$0xff]
        %v327 = vld [vmem:[%s186 + $0x2b8] sm:$0xff]
        %v328 = vld [vmem:[%s186 + $0x2c0] sm:$0xff]
        %v329 = vld [vmem:[%s186 + $0x2c8] sm:$0xff]
        %v330 = vld [vmem:[%s186 + $0x2d0] sm:$0xff]
        %v331 = vld [vmem:[%s186 + $0x2d8] sm:$0xff]
        %v332 = vld [vmem:[%s186 + $0x2e0] sm:$0xff]
        %v333 = vld [vmem:[%s186 + $0x2e8] sm:$0xff]
        %v334 = vld [vmem:[%s186 + $0x2f0] sm:$0xff]
        %v335 = vld [vmem:[%s186 + $0x2f8] sm:$0xff]
        %v336 = vld [vmem:[%s186 + $0x300] sm:$0xff]
        %v337 = vld [vmem:[%s186 + $0x308] sm:$0xff]
        %v338 = vld [vmem:[%s186 + $0x310] sm:$0xff]
        %v339 = vld [vmem:[%s186 + $0x318] sm:$0xff]
        %v340 = vld [vmem:[%s186 + $0x320] sm:$0xff]
        %v341 = vld [vmem:[%s186 + $0x328] sm:$0xff]
        %v342 = vld [vmem:[%s186 + $0x330] sm:$0xff]
        %v343 = vld [vmem:[%s186 + $0x338] sm:$0xff]
        %v344 = vld [vmem:[%s186 + $0x340] sm:$0xff]
        %v345 = vld [vmem:[%s186 + $0x348] sm:$0xff]
        %v346 = vld [vmem:[%s186 + $0x350] sm:$0xff]
        %v347 = vld [vmem:[%s186 + $0x358] sm:$0xff]
        %v348 = vld [vmem:[%s186 + $0x360] sm:$0xff]
        %v349 = vld [vmem:[%s186 + $0x368] sm:$0xff]
        %v350 = vld [vmem:[%s186 + $0x370] sm:$0xff]
        %v351 = vld [vmem:[%s186 + $0x378] sm:$0xff]
        %v352 = vld [vmem:[%s186 + $0x380] sm:$0xff]
        %v353 = vld [vmem:[%s186 + $0x388] sm:$0xff]
        %v354 = vld [vmem:[%s186 + $0x390] sm:$0xff]
        %v355 = vld [vmem:[%s186 + $0x398] sm:$0xff]
        %v356 = vld [vmem:[%s186 + $0x3a0] sm:$0xff]
        %v357 = vld [vmem:[%s186 + $0x3a8] sm:$0xff]
        %v358 = vld [vmem:[%s186 + $0x3b0] sm:$0xff]
        %v359 = vld [vmem:[%s186 + $0x3b8] sm:$0xff]
        %v360 = vld [vmem:[%s186 + $0x3c0] sm:$0xff]
        %v361 = vld [vmem:[%s186 + $0x3c8] sm:$0xff]
        %v362 = vld [vmem:[%s186 + $0x3d0] sm:$0xff]
        %v363 = vld [vmem:[%s186 + $0x3d8] sm:$0xff]
        %v364 = vld [vmem:[%s186 + $0x3e0] sm:$0xff]
        %v365 = vld [vmem:[%s186 + $0x3e8] sm:$0xff]
        %v366 = vld [vmem:[%s186 + $0x3f0] sm:$0xff]
        %v367 = vld [vmem:[%s186 + $0x3f8] sm:$0xff]
        %v372 = vunpack.c.l.b16 %v228
        %v373 = vunpack.c.h.b16 %v228
        %v374 = vunpack.c.l.b16 %v229
        %v375 = vunpack.c.h.b16 %v229
        %v376 = vunpack.c.l.b16 %v230
        %v377 = vunpack.c.h.b16 %v230
        %v378 = vunpack.c.l.b16 %v231
        %v379 = vunpack.c.h.b16 %v231
        %v380 = vpack.c.b16 %v376, %v372
        %v381 = vpack.c.b16 %v377, %v373
        %v382 = vpack.c.b16 %v378, %v374
        %v383 = vpack.c.b16 %v379, %v375
        %v516 = vunpack.c.l.b16 %v240
        %v517 = vunpack.c.h.b16 %v240
        %v518 = vunpack.c.l.b16 %v241
        %v519 = vunpack.c.h.b16 %v241
        %v520 = vunpack.c.l.b16 %v242
        %v521 = vunpack.c.h.b16 %v242
        %v522 = vunpack.c.l.b16 %v243
        %v523 = vunpack.c.h.b16 %v243
        %v524 = vunpack.c.l.b16 %v244
        %v525 = vunpack.c.h.b16 %v244
        %v526 = vunpack.c.l.b16 %v245
        %v527 = vunpack.c.h.b16 %v245
        %v528 = vunpack.c.l.b16 %v246
        %v529 = vunpack.c.h.b16 %v246
        %v530 = vunpack.c.l.b16 %v247
        %v531 = vunpack.c.h.b16 %v247
        %v532 = vunpack.c.l.b16 %v248
        %v533 = vunpack.c.h.b16 %v248
        %v534 = vunpack.c.l.b16 %v249
        %v535 = vunpack.c.h.b16 %v249
        %v536 = vunpack.c.l.b16 %v250
        %v537 = vunpack.c.h.b16 %v250
        %v538 = vunpack.c.l.b16 %v251
        %v539 = vunpack.c.h.b16 %v251
        %v540 = vunpack.c.l.b16 %v252
        %v541 = vunpack.c.h.b16 %v252
        %v542 = vunpack.c.l.b16 %v253
        %v543 = vunpack.c.h.b16 %v253
        %v544 = vunpack.c.l.b16 %v254
        %v545 = vunpack.c.h.b16 %v254
        %v546 = vunpack.c.l.b16 %v255
        %v547 = vunpack.c.h.b16 %v255
        %v548 = vunpack.c.l.b16 %v256
        %v549 = vunpack.c.h.b16 %v256
        %v550 = vunpack.c.l.b16 %v257
        %v551 = vunpack.c.h.b16 %v257
        %v552 = vunpack.c.l.b16 %v258
        %v553 = vunpack.c.h.b16 %v258
        %v554 = vunpack.c.l.b16 %v259
        %v555 = vunpack.c.h.b16 %v259
        %v556 = vunpack.c.l.b16 %v260
        %v557 = vunpack.c.h.b16 %v260
        %v558 = vunpack.c.l.b16 %v261
        %v559 = vunpack.c.h.b16 %v261
        %v560 = vunpack.c.l.b16 %v262
        %v561 = vunpack.c.h.b16 %v262
        %v562 = vunpack.c.l.b16 %v263
        %v563 = vunpack.c.h.b16 %v263
        %v564 = vunpack.c.l.b16 %v264
        %v565 = vunpack.c.h.b16 %v264
        %v566 = vunpack.c.l.b16 %v265
        %v567 = vunpack.c.h.b16 %v265
        %v568 = vunpack.c.l.b16 %v266
        %v569 = vunpack.c.h.b16 %v266
        %v570 = vunpack.c.l.b16 %v267
        %v571 = vunpack.c.h.b16 %v267
        %v572 = vunpack.c.l.b16 %v268
        %v573 = vunpack.c.h.b16 %v268
        %v574 = vunpack.c.l.b16 %v269
        %v575 = vunpack.c.h.b16 %v269
        %v576 = vunpack.c.l.b16 %v270
        %v577 = vunpack.c.h.b16 %v270
        %v578 = vunpack.c.l.b16 %v271
        %v579 = vunpack.c.h.b16 %v271
        %v580 = vunpack.c.l.b16 %v272
        %v581 = vunpack.c.h.b16 %v272
        %v582 = vunpack.c.l.b16 %v273
        %v583 = vunpack.c.h.b16 %v273
        %v584 = vunpack.c.l.b16 %v274
        %v585 = vunpack.c.h.b16 %v274
        %v586 = vunpack.c.l.b16 %v275
        %v587 = vunpack.c.h.b16 %v275
        %v588 = vunpack.c.l.b16 %v276
        %v589 = vunpack.c.h.b16 %v276
        %v590 = vunpack.c.l.b16 %v277
        %v591 = vunpack.c.h.b16 %v277
        %v592 = vunpack.c.l.b16 %v278
        %v593 = vunpack.c.h.b16 %v278
        %v594 = vunpack.c.l.b16 %v279
        %v595 = vunpack.c.h.b16 %v279
        %v596 = vunpack.c.l.b16 %v280
        %v597 = vunpack.c.h.b16 %v280
        %v598 = vunpack.c.l.b16 %v281
        %v599 = vunpack.c.h.b16 %v281
        %v600 = vunpack.c.l.b16 %v282
        %v601 = vunpack.c.h.b16 %v282
        %v602 = vunpack.c.l.b16 %v283
        %v603 = vunpack.c.h.b16 %v283
        %v604 = vunpack.c.l.b16 %v284
        %v605 = vunpack.c.h.b16 %v284
        %v606 = vunpack.c.l.b16 %v285
        %v607 = vunpack.c.h.b16 %v285
        %v608 = vunpack.c.l.b16 %v286
        %v609 = vunpack.c.h.b16 %v286
        %v610 = vunpack.c.l.b16 %v287
        %v611 = vunpack.c.h.b16 %v287
        %v612 = vunpack.c.l.b16 %v288
        %v613 = vunpack.c.h.b16 %v288
        %v614 = vunpack.c.l.b16 %v289
        %v615 = vunpack.c.h.b16 %v289
        %v616 = vunpack.c.l.b16 %v290
        %v617 = vunpack.c.h.b16 %v290
        %v618 = vunpack.c.l.b16 %v291
        %v619 = vunpack.c.h.b16 %v291
        %v620 = vunpack.c.l.b16 %v292
        %v621 = vunpack.c.h.b16 %v292
        %v622 = vunpack.c.l.b16 %v293
        %v623 = vunpack.c.h.b16 %v293
        %v624 = vunpack.c.l.b16 %v294
        %v625 = vunpack.c.h.b16 %v294
        %v626 = vunpack.c.l.b16 %v295
        %v627 = vunpack.c.h.b16 %v295
        %v628 = vunpack.c.l.b16 %v296
        %v629 = vunpack.c.h.b16 %v296
        %v630 = vunpack.c.l.b16 %v297
        %v631 = vunpack.c.h.b16 %v297
        %v632 = vunpack.c.l.b16 %v298
        %v633 = vunpack.c.h.b16 %v298
        %v634 = vunpack.c.l.b16 %v299
        %v635 = vunpack.c.h.b16 %v299
        %v636 = vunpack.c.l.b16 %v300
        %v637 = vunpack.c.h.b16 %v300
        %v638 = vunpack.c.l.b16 %v301
        %v639 = vunpack.c.h.b16 %v301
        %v640 = vunpack.c.l.b16 %v302
        %v641 = vunpack.c.h.b16 %v302
        %v642 = vunpack.c.l.b16 %v303
        %v643 = vunpack.c.h.b16 %v303
        %v644 = vunpack.c.l.b16 %v304
        %v645 = vunpack.c.h.b16 %v304
        %v646 = vunpack.c.l.b16 %v305
        %v647 = vunpack.c.h.b16 %v305
        %v648 = vunpack.c.l.b16 %v306
        %v649 = vunpack.c.h.b16 %v306
        %v650 = vunpack.c.l.b16 %v307
        %v651 = vunpack.c.h.b16 %v307
        %v652 = vunpack.c.l.b16 %v308
        %v653 = vunpack.c.h.b16 %v308
        %v654 = vunpack.c.l.b16 %v309
        %v655 = vunpack.c.h.b16 %v309
        %v656 = vunpack.c.l.b16 %v310
        %v657 = vunpack.c.h.b16 %v310
        %v658 = vunpack.c.l.b16 %v311
        %v659 = vunpack.c.h.b16 %v311
        %v660 = vunpack.c.l.b16 %v312
        %v661 = vunpack.c.h.b16 %v312
        %v662 = vunpack.c.l.b16 %v313
        %v663 = vunpack.c.h.b16 %v313
        %v664 = vunpack.c.l.b16 %v314
        %v665 = vunpack.c.h.b16 %v314
        %v666 = vunpack.c.l.b16 %v315
        %v667 = vunpack.c.h.b16 %v315
        %v668 = vunpack.c.l.b16 %v316
        %v669 = vunpack.c.h.b16 %v316
        %v670 = vunpack.c.l.b16 %v317
        %v671 = vunpack.c.h.b16 %v317
        %v672 = vunpack.c.l.b16 %v318
        %v673 = vunpack.c.h.b16 %v318
        %v674 = vunpack.c.l.b16 %v319
        %v675 = vunpack.c.h.b16 %v319
        %v676 = vunpack.c.l.b16 %v320
        %v677 = vunpack.c.h.b16 %v320
        %v678 = vunpack.c.l.b16 %v321
        %v679 = vunpack.c.h.b16 %v321
        %v680 = vunpack.c.l.b16 %v322
        %v681 = vunpack.c.h.b16 %v322
        %v682 = vunpack.c.l.b16 %v323
        %v683 = vunpack.c.h.b16 %v323
        %v684 = vunpack.c.l.b16 %v324
        %v685 = vunpack.c.h.b16 %v324
        %v686 = vunpack.c.l.b16 %v325
        %v687 = vunpack.c.h.b16 %v325
        %v688 = vunpack.c.l.b16 %v326
        %v689 = vunpack.c.h.b16 %v326
        %v690 = vunpack.c.l.b16 %v327
        %v691 = vunpack.c.h.b16 %v327
        %v692 = vunpack.c.l.b16 %v328
        %v693 = vunpack.c.h.b16 %v328
        %v694 = vunpack.c.l.b16 %v329
        %v695 = vunpack.c.h.b16 %v329
        %v696 = vunpack.c.l.b16 %v330
        %v697 = vunpack.c.h.b16 %v330
        %v698 = vunpack.c.l.b16 %v331
        %v699 = vunpack.c.h.b16 %v331
        %v700 = vunpack.c.l.b16 %v332
        %v701 = vunpack.c.h.b16 %v332
        %v702 = vunpack.c.l.b16 %v333
        %v703 = vunpack.c.h.b16 %v333
        %v704 = vunpack.c.l.b16 %v334
        %v705 = vunpack.c.h.b16 %v334
        %v706 = vunpack.c.l.b16 %v335
        %v707 = vunpack.c.h.b16 %v335
        %v708 = vunpack.c.l.b16 %v336
        %v709 = vunpack.c.h.b16 %v336
        %v710 = vunpack.c.l.b16 %v337
        %v711 = vunpack.c.h.b16 %v337
        %v712 = vunpack.c.l.b16 %v338
        %v713 = vunpack.c.h.b16 %v338
        %v714 = vunpack.c.l.b16 %v339
        %v715 = vunpack.c.h.b16 %v339
        %v716 = vunpack.c.l.b16 %v340
        %v717 = vunpack.c.h.b16 %v340
        %v718 = vunpack.c.l.b16 %v341
        %v719 = vunpack.c.h.b16 %v341
        %v720 = vunpack.c.l.b16 %v342
        %v721 = vunpack.c.h.b16 %v342
        %v722 = vunpack.c.l.b16 %v343
        %v723 = vunpack.c.h.b16 %v343
        %v724 = vunpack.c.l.b16 %v344
        %v725 = vunpack.c.h.b16 %v344
        %v726 = vunpack.c.l.b16 %v345
        %v727 = vunpack.c.h.b16 %v345
        %v728 = vunpack.c.l.b16 %v346
        %v729 = vunpack.c.h.b16 %v346
        %v730 = vunpack.c.l.b16 %v347
        %v731 = vunpack.c.h.b16 %v347
        %v732 = vunpack.c.l.b16 %v348
        %v733 = vunpack.c.h.b16 %v348
        %v734 = vunpack.c.l.b16 %v349
        %v735 = vunpack.c.h.b16 %v349
        %v736 = vunpack.c.l.b16 %v350
        %v737 = vunpack.c.h.b16 %v350
        %v738 = vunpack.c.l.b16 %v351
        %v739 = vunpack.c.h.b16 %v351
        %v740 = vunpack.c.l.b16 %v352
        %v741 = vunpack.c.h.b16 %v352
        %v742 = vunpack.c.l.b16 %v353
        %v743 = vunpack.c.h.b16 %v353
        %v744 = vunpack.c.l.b16 %v354
        %v745 = vunpack.c.h.b16 %v354
        %v746 = vunpack.c.l.b16 %v355
        %v747 = vunpack.c.h.b16 %v355
        %v748 = vunpack.c.l.b16 %v356
        %v749 = vunpack.c.h.b16 %v356
        %v750 = vunpack.c.l.b16 %v357
        %v751 = vunpack.c.h.b16 %v357
        %v752 = vunpack.c.l.b16 %v358
        %v753 = vunpack.c.h.b16 %v358
        %v754 = vunpack.c.l.b16 %v359
        %v755 = vunpack.c.h.b16 %v359
        %v756 = vunpack.c.l.b16 %v360
        %v757 = vunpack.c.h.b16 %v360
        %v758 = vunpack.c.l.b16 %v361
        %v759 = vunpack.c.h.b16 %v361
        %v760 = vunpack.c.l.b16 %v362
        %v761 = vunpack.c.h.b16 %v362
        %v762 = vunpack.c.l.b16 %v363
        %v763 = vunpack.c.h.b16 %v363
        %v764 = vunpack.c.l.b16 %v364
        %v765 = vunpack.c.h.b16 %v364
        %v766 = vunpack.c.l.b16 %v365
        %v767 = vunpack.c.h.b16 %v365
        %v768 = vunpack.c.l.b16 %v366
        %v769 = vunpack.c.h.b16 %v366
        %v770 = vunpack.c.l.b16 %v367
        %v771 = vunpack.c.h.b16 %v367
        %v772 = vpack.c.b16 %v520, %v516
        %v773 = vpack.c.b16 %v521, %v517
        %v774 = vpack.c.b16 %v522, %v518
        %v775 = vpack.c.b16 %v523, %v519
        %v776 = vpack.c.b16 %v528, %v524
        %v777 = vpack.c.b16 %v529, %v525
        %v778 = vpack.c.b16 %v530, %v526
        %v779 = vpack.c.b16 %v531, %v527
        %v780 = vpack.c.b16 %v536, %v532
        %v781 = vpack.c.b16 %v537, %v533
        %v782 = vpack.c.b16 %v538, %v534
        %v783 = vpack.c.b16 %v539, %v535
        %v784 = vpack.c.b16 %v544, %v540
        %v785 = vpack.c.b16 %v545, %v541
        %v786 = vpack.c.b16 %v546, %v542
        %v787 = vpack.c.b16 %v547, %v543
        %v788 = vpack.c.b16 %v552, %v548
        %v789 = vpack.c.b16 %v553, %v549
        %v790 = vpack.c.b16 %v554, %v550
        %v791 = vpack.c.b16 %v555, %v551
        %v792 = vpack.c.b16 %v560, %v556
        %v793 = vpack.c.b16 %v561, %v557
        %v794 = vpack.c.b16 %v562, %v558
        %v795 = vpack.c.b16 %v563, %v559
        %v796 = vpack.c.b16 %v568, %v564
        %v797 = vpack.c.b16 %v569, %v565
        %v798 = vpack.c.b16 %v570, %v566
        %v799 = vpack.c.b16 %v571, %v567
        %v800 = vpack.c.b16 %v576, %v572
        %v801 = vpack.c.b16 %v577, %v573
        %v802 = vpack.c.b16 %v578, %v574
        %v803 = vpack.c.b16 %v579, %v575
        %v804 = vpack.c.b16 %v584, %v580
        %v805 = vpack.c.b16 %v585, %v581
        %v806 = vpack.c.b16 %v586, %v582
        %v807 = vpack.c.b16 %v587, %v583
        %v808 = vpack.c.b16 %v592, %v588
        %v809 = vpack.c.b16 %v593, %v589
        %v810 = vpack.c.b16 %v594, %v590
        %v811 = vpack.c.b16 %v595, %v591
        %v812 = vpack.c.b16 %v600, %v596
        %v813 = vpack.c.b16 %v601, %v597
        %v814 = vpack.c.b16 %v602, %v598
        %v815 = vpack.c.b16 %v603, %v599
        %v816 = vpack.c.b16 %v608, %v604
        %v817 = vpack.c.b16 %v609, %v605
        %v818 = vpack.c.b16 %v610, %v606
        %v819 = vpack.c.b16 %v611, %v607
        %v820 = vpack.c.b16 %v616, %v612
        %v821 = vpack.c.b16 %v617, %v613
        %v822 = vpack.c.b16 %v618, %v614
        %v823 = vpack.c.b16 %v619, %v615
        %v824 = vpack.c.b16 %v624, %v620
        %v825 = vpack.c.b16 %v625, %v621
        %v826 = vpack.c.b16 %v626, %v622
        %v827 = vpack.c.b16 %v627, %v623
        %v828 = vpack.c.b16 %v632, %v628
        %v829 = vpack.c.b16 %v633, %v629
        %v830 = vpack.c.b16 %v634, %v630
        %v831 = vpack.c.b16 %v635, %v631
        %v832 = vpack.c.b16 %v640, %v636
        %v833 = vpack.c.b16 %v641, %v637
        %v834 = vpack.c.b16 %v642, %v638
        %v835 = vpack.c.b16 %v643, %v639
        %v836 = vpack.c.b16 %v648, %v644
        %v837 = vpack.c.b16 %v649, %v645
        %v838 = vpack.c.b16 %v650, %v646
        %v839 = vpack.c.b16 %v651, %v647
        %v840 = vpack.c.b16 %v656, %v652
        %v841 = vpack.c.b16 %v657, %v653
        %v842 = vpack.c.b16 %v658, %v654
        %v843 = vpack.c.b16 %v659, %v655
        %v844 = vpack.c.b16 %v664, %v660
        %v845 = vpack.c.b16 %v665, %v661
        %v846 = vpack.c.b16 %v666, %v662
        %v847 = vpack.c.b16 %v667, %v663
        %v848 = vpack.c.b16 %v672, %v668
        %v849 = vpack.c.b16 %v673, %v669
        %v850 = vpack.c.b16 %v674, %v670
        %v851 = vpack.c.b16 %v675, %v671
        %v852 = vpack.c.b16 %v680, %v676
        %v853 = vpack.c.b16 %v681, %v677
        %v854 = vpack.c.b16 %v682, %v678
        %v855 = vpack.c.b16 %v683, %v679
        %v856 = vpack.c.b16 %v688, %v684
        %v857 = vpack.c.b16 %v689, %v685
        %v858 = vpack.c.b16 %v690, %v686
        %v859 = vpack.c.b16 %v691, %v687
        %v860 = vpack.c.b16 %v696, %v692
        %v861 = vpack.c.b16 %v697, %v693
        %v862 = vpack.c.b16 %v698, %v694
        %v863 = vpack.c.b16 %v699, %v695
        %v864 = vpack.c.b16 %v704, %v700
        %v865 = vpack.c.b16 %v705, %v701
        %v866 = vpack.c.b16 %v706, %v702
        %v867 = vpack.c.b16 %v707, %v703
        %v868 = vpack.c.b16 %v712, %v708
        %v869 = vpack.c.b16 %v713, %v709
        %v870 = vpack.c.b16 %v714, %v710
        %v871 = vpack.c.b16 %v715, %v711
        %v872 = vpack.c.b16 %v720, %v716
        %v873 = vpack.c.b16 %v721, %v717
        %v874 = vpack.c.b16 %v722, %v718
        %v875 = vpack.c.b16 %v723, %v719
        %v876 = vpack.c.b16 %v728, %v724
        %v877 = vpack.c.b16 %v729, %v725
        %v878 = vpack.c.b16 %v730, %v726
        %v879 = vpack.c.b16 %v731, %v727
        %v880 = vpack.c.b16 %v736, %v732
        %v881 = vpack.c.b16 %v737, %v733
        %v882 = vpack.c.b16 %v738, %v734
        %v883 = vpack.c.b16 %v739, %v735
        %v884 = vpack.c.b16 %v744, %v740
        %v885 = vpack.c.b16 %v745, %v741
        %v886 = vpack.c.b16 %v746, %v742
        %v887 = vpack.c.b16 %v747, %v743
        %v888 = vpack.c.b16 %v752, %v748
        %v889 = vpack.c.b16 %v753, %v749
        %v890 = vpack.c.b16 %v754, %v750
        %v891 = vpack.c.b16 %v755, %v751
        %v892 = vpack.c.b16 %v760, %v756
        %v893 = vpack.c.b16 %v761, %v757
        %v894 = vpack.c.b16 %v762, %v758
        %v895 = vpack.c.b16 %v763, %v759
        %v896 = vpack.c.b16 %v768, %v764
        %v897 = vpack.c.b16 %v769, %v765
        %v898 = vpack.c.b16 %v770, %v766
        %v899 = vpack.c.b16 %v771, %v767
        %1028 = vmatprep.subr.bf16.mxu0 %v773
        %1029 = vmatpush1.bf16.msra.mxu0 %v772
        %1030 = vmatprep.subr.bf16.mxu0 %v777
        %1031 = vmatpush1.bf16.msra.mxu0 %v776
        %1032 = vmatprep.subr.bf16.mxu0 %v781
        %1033 = vmatpush1.bf16.msra.mxu0 %v780
        %1034 = vmatprep.subr.bf16.mxu0 %v785
        %1035 = vmatpush1.bf16.msra.mxu0 %v784
        %1036 = vmatprep.subr.bf16.mxu0 %v789
        %1037 = vmatpush1.bf16.msra.mxu0 %v788
        %1038 = vmatprep.subr.bf16.mxu0 %v793
        %1039 = vmatpush1.bf16.msra.mxu0 %v792
        %1040 = vmatprep.subr.bf16.mxu0 %v797
        %1041 = vmatpush1.bf16.msra.mxu0 %v796
        %1042 = vmatprep.subr.bf16.mxu0 %v801
        %1043 = vmatpush1.bf16.msra.mxu0 %v800
        %1044 = vmatprep.subr.bf16.mxu0 %v805
        %1045 = vmatpush1.bf16.msra.mxu0 %v804
        %1046 = vmatprep.subr.bf16.mxu0 %v809
        %1047 = vmatpush1.bf16.msra.mxu0 %v808
        %1048 = vmatprep.subr.bf16.mxu0 %v813
        %1049 = vmatpush1.bf16.msra.mxu0 %v812
        %1050 = vmatprep.subr.bf16.mxu0 %v817
        %1051 = vmatpush1.bf16.msra.mxu0 %v816
        %1052 = vmatprep.subr.bf16.mxu0 %v821
        %1053 = vmatpush1.bf16.msra.mxu0 %v820
        %1054 = vmatprep.subr.bf16.mxu0 %v825
        %1055 = vmatpush1.bf16.msra.mxu0 %v824
        %1056 = vmatprep.subr.bf16.mxu0 %v829
        %1057 = vmatpush1.bf16.msra.mxu0 %v828
        %1058 = vmatprep.subr.bf16.mxu0 %v833
        %1059 = vmatpush1.bf16.msra.mxu0 %v832
        %1060 = vmatprep.mubr.bf16.mxu0 %v381
        %1061 = vmatmul.mubr.bf16.gmra.mrb[0].mxu0 %v380
        %v1062 = vpop.f32.mrb[0].mxu0
        %v1063 = vadd.f32 0.0, %v1062
        %v1064 = vpop.f32.mrb[0].mxu0
        %v1065 = vadd.f32 0.0, %v1064
        %v1066 = vpop.f32.mrb[0].mxu0
        %v1067 = vadd.f32 0.0, %v1066
        %v1068 = vpop.f32.mrb[0].mxu0
        %v1069 = vadd.f32 0.0, %v1068
        %1070 = vdwg.mxu0
        %1071 = vmatprep.subr.bf16.mxu0 %v837
        %1072 = vmatpush1.bf16.msra.mxu0 %v836
        %1073 = vmatprep.subr.bf16.mxu0 %v841
        %1074 = vmatpush1.bf16.msra.mxu0 %v840
        %1075 = vmatprep.subr.bf16.mxu0 %v845
        %1076 = vmatpush1.bf16.msra.mxu0 %v844
        %1077 = vmatprep.subr.bf16.mxu0 %v849
        %1078 = vmatpush1.bf16.msra.mxu0 %v848
        %1079 = vmatprep.subr.bf16.mxu0 %v853
        %1080 = vmatpush1.bf16.msra.mxu0 %v852
        %1081 = vmatprep.subr.bf16.mxu0 %v857
        %1082 = vmatpush1.bf16.msra.mxu0 %v856
        %1083 = vmatprep.subr.bf16.mxu0 %v861
        %1084 = vmatpush1.bf16.msra.mxu0 %v860
        %1085 = vmatprep.subr.bf16.mxu0 %v865
        %1086 = vmatpush1.bf16.msra.mxu0 %v864
        %1087 = vmatprep.subr.bf16.mxu0 %v869
        %1088 = vmatpush1.bf16.msra.mxu0 %v868
        %1089 = vmatprep.subr.bf16.mxu0 %v873
        %1090 = vmatpush1.bf16.msra.mxu0 %v872
        %1091 = vmatprep.subr.bf16.mxu0 %v877
        %1092 = vmatpush1.bf16.msra.mxu0 %v876
        %1093 = vmatprep.subr.bf16.mxu0 %v881
        %1094 = vmatpush1.bf16.msra.mxu0 %v880
        %1095 = vmatprep.subr.bf16.mxu0 %v885
        %1096 = vmatpush1.bf16.msra.mxu0 %v884
        %1097 = vmatprep.subr.bf16.mxu0 %v889
        %1098 = vmatpush1.bf16.msra.mxu0 %v888
        %1099 = vmatprep.subr.bf16.mxu0 %v893
        %1100 = vmatpush1.bf16.msra.mxu0 %v892
        %1101 = vmatprep.subr.bf16.mxu0 %v897
        %1102 = vmatpush1.bf16.msra.mxu0 %v896
        %1103 = vmatprep.mubr.bf16.mxu0 %v383
        %1104 = vmatmul.mubr.bf16.gmra.mrb[0].mxu0 %v382
        %v1105 = vpop.f32.mrb[0].mxu0
        %v1106 = vadd.f32 %v1063, %v1105
        %v1107 = vpop.f32.mrb[0].mxu0
        %v1108 = vadd.f32 %v1065, %v1107
        %v1109 = vpop.f32.mrb[0].mxu0
        %v1110 = vadd.f32 %v1067, %v1109
        %v1111 = vpop.f32.mrb[0].mxu0
        %v1112 = vadd.f32 %v1069, %v1111
        %1113 = vdwg.mxu0
        %1114 = vmatprep.subr.bf16.mxu0 %v775
        %1115 = vmatpush1.bf16.msra.mxu0 %v774
        %1116 = vmatprep.subr.bf16.mxu0 %v779
        %1117 = vmatpush1.bf16.msra.mxu0 %v778
        %1118 = vmatprep.subr.bf16.mxu0 %v783
        %1119 = vmatpush1.bf16.msra.mxu0 %v782
        %1120 = vmatprep.subr.bf16.mxu0 %v787
        %1121 = vmatpush1.bf16.msra.mxu0 %v786
        %1122 = vmatprep.subr.bf16.mxu0 %v791
        %1123 = vmatpush1.bf16.msra.mxu0 %v790
        %1124 = vmatprep.subr.bf16.mxu0 %v795
        %1125 = vmatpush1.bf16.msra.mxu0 %v794
        %1126 = vmatprep.subr.bf16.mxu0 %v799
        %1127 = vmatpush1.bf16.msra.mxu0 %v798
        %1128 = vmatprep.subr.bf16.mxu0 %v803
        %1129 = vmatpush1.bf16.msra.mxu0 %v802
        %1130 = vmatprep.subr.bf16.mxu0 %v807
        %1131 = vmatpush1.bf16.msra.mxu0 %v806
        %1132 = vmatprep.subr.bf16.mxu0 %v811
        %1133 = vmatpush1.bf16.msra.mxu0 %v810
        %1134 = vmatprep.subr.bf16.mxu0 %v815
        %1135 = vmatpush1.bf16.msra.mxu0 %v814
        %1136 = vmatprep.subr.bf16.mxu0 %v819
        %1137 = vmatpush1.bf16.msra.mxu0 %v818
        %1138 = vmatprep.subr.bf16.mxu0 %v823
        %1139 = vmatpush1.bf16.msra.mxu0 %v822
        %1140 = vmatprep.subr.bf16.mxu0 %v827
        %1141 = vmatpush1.bf16.msra.mxu0 %v826
        %1142 = vmatprep.subr.bf16.mxu0 %v831
        %1143 = vmatpush1.bf16.msra.mxu0 %v830
        %1144 = vmatprep.subr.bf16.mxu0 %v835
        %1145 = vmatpush1.bf16.msra.mxu0 %v834
        %1146 = vmatprep.mubr.bf16.mxu0 %v381
        %1147 = vmatmul.mubr.bf16.gmra.mrb[0].mxu0 %v380
        %v1148 = vpop.f32.mrb[0].mxu0
        %v1149 = vadd.f32 0.0, %v1148
        %v1150 = vpop.f32.mrb[0].mxu0
        %v1151 = vadd.f32 0.0, %v1150
        %v1152 = vpop.f32.mrb[0].mxu0
        %v1153 = vadd.f32 0.0, %v1152
        %v1154 = vpop.f32.mrb[0].mxu0
        %v1155 = vadd.f32 0.0, %v1154
        %1156 = vdwg.mxu0
        %1157 = vmatprep.subr.bf16.mxu0 %v839
        %1158 = vmatpush1.bf16.msra.mxu0 %v838
        %1159 = vmatprep.subr.bf16.mxu0 %v843
        %1160 = vmatpush1.bf16.msra.mxu0 %v842
        %1161 = vmatprep.subr.bf16.mxu0 %v847
        %1162 = vmatpush1.bf16.msra.mxu0 %v846
        %1163 = vmatprep.subr.bf16.mxu0 %v851
        %1164 = vmatpush1.bf16.msra.mxu0 %v850
        %1165 = vmatprep.subr.bf16.mxu0 %v855
        %1166 = vmatpush1.bf16.msra.mxu0 %v854
        %1167 = vmatprep.subr.bf16.mxu0 %v859
        %1168 = vmatpush1.bf16.msra.mxu0 %v858
        %1169 = vmatprep.subr.bf16.mxu0 %v863
        %1170 = vmatpush1.bf16.msra.mxu0 %v862
        %1171 = vmatprep.subr.bf16.mxu0 %v867
        %1172 = vmatpush1.bf16.msra.mxu0 %v866
        %1173 = vmatprep.subr.bf16.mxu0 %v871
        %1174 = vmatpush1.bf16.msra.mxu0 %v870
        %1175 = vmatprep.subr.bf16.mxu0 %v875
        %1176 = vmatpush1.bf16.msra.mxu0 %v874
        %1177 = vmatprep.subr.bf16.mxu0 %v879
        %1178 = vmatpush1.bf16.msra.mxu0 %v878
        %1179 = vmatprep.subr.bf16.mxu0 %v883
        %1180 = vmatpush1.bf16.msra.mxu0 %v882
        %1181 = vmatprep.subr.bf16.mxu0 %v887
        %1182 = vmatpush1.bf16.msra.mxu0 %v886
        %1183 = vmatprep.subr.bf16.mxu0 %v891
        %1184 = vmatpush1.bf16.msra.mxu0 %v890
        %1185 = vmatprep.subr.bf16.mxu0 %v895
        %1186 = vmatpush1.bf16.msra.mxu0 %v894
        %1187 = vmatprep.subr.bf16.mxu0 %v899
        %1188 = vmatpush1.bf16.msra.mxu0 %v898
        %1189 = vmatprep.mubr.bf16.mxu0 %v383
        %1190 = vmatmul.mubr.bf16.gmra.mrb[0].mxu0 %v382
        %v1191 = vpop.f32.mrb[0].mxu0
        %v1192 = vadd.f32 %v1149, %v1191
        %v1193 = vpop.f32.mrb[0].mxu0
        %v1194 = vadd.f32 %v1151, %v1193
        %v1195 = vpop.f32.mrb[0].mxu0
        %v1196 = vadd.f32 %v1153, %v1195
        %v1197 = vpop.f32.mrb[0].mxu0
        %v1198 = vadd.f32 %v1155, %v1197
        %1199 = vdwg.mxu0
        %v1200 = vadd.f32 %v232, %v1106
        %v1201 = vadd.f32 %v233, %v1108
        %v1202 = vadd.f32 %v234, %v1192
        %v1203 = vadd.f32 %v235, %v1194
        %v1204 = vadd.f32 %v236, %v1110
        %v1205 = vadd.f32 %v237, %v1112
        %v1206 = vadd.f32 %v238, %v1196
        %v1207 = vadd.f32 %v239, %v1198
        %1208 = vst [vmem:[%s206] sm:$0xff] %v1200
        %1209 = vst [vmem:[%s206 + $0x8] sm:$0xff] %v1201
        %1210 = vst [vmem:[%s206 + $0x10] sm:$0xff] %v1202
        %1211 = vst [vmem:[%s206 + $0x18] sm:$0xff] %v1203
        %1212 = vst [vmem:[%s206 + $0x20] sm:$0xff] %v1204
        %1213 = vst [vmem:[%s206 + $0x28] sm:$0xff] %v1205
        %1214 = vst [vmem:[%s206 + $0x30] sm:$0xff] %v1206
        %1215 = vst [vmem:[%s206 + $0x38] sm:$0xff] %v1207
        %s1216 = sand.u32 %s100, 1
        %s1217 = scalar_lea.sflag [#allocation4], %s1216
        %s1218 = sand.u32 %s100, 1
        %s1219 = smul.addr %s1218, 64
        %s1220 = scalar_lea.vmem [#allocation7], %s1219
        // Predicated region
        $region41: #{tpu_custom_call.1} parent=27 // pred_check
          %p1221 = pneg %p110
        $region42: #{tpu_custom_call.1} parent=27 // pred_check_branch
          %1223 = sbr.rel (%p1221) target = $region44
        $region43: #{tpu_custom_call.1} parent=27 // pred_region
          %s1224 = sadd.s32 %s25, %s26
          %s1225 = smul.u32 4, %s1224
          %s1227 = ssub.s32 1024, 1024
          %1228 = vsyncadd %s1217, %s1227
          %s1229 = smul.addr %s1225, 128
          %s1230 = scalar_lea.hbm %s2, %s1229
          %s1231 = sshll.u32 %s1220, 4
          %s1232 = int_to_ptr.vmem [resolvable:$true] %s1231
          %1237 = dma.vmem_to_hbm [thread:$0]  %s1232, 1024, %s1230, %s1217, 512, 1536, 32
        $region44: #{tpu_custom_call.1} parent=27 // pred_fallthru
          _
      $region28: #{tpu_custom_call.1} parent=5 // pred_fallthru
        _
      %p1238 = scmp.le.s32.totalorder 2, %s15
      // Predicated region
      $region45: #{tpu_custom_call.1} parent=5 // pred_check
        %p1239 = pneg %p1238
      $region46: #{tpu_custom_call.1} parent=5 // pred_check_branch
        %1241 = sbr.rel (%p1239) target = $region48
      $region47: #{tpu_custom_call.1} parent=5 // pred_region
        %s1242 = ssub.s32 %s15, 2
        // Predicated region
        $region49: #{tpu_custom_call.1} parent=47 // pred_check
          %p1243 = pneg %p116
        $region50: #{tpu_custom_call.1} parent=47 // pred_check_branch
          %1245 = sbr.rel (%p1243) target = $region52
        $region51: #{tpu_custom_call.1} parent=47 // pred_region
          %s1246 = sand.u32 %s101, 1
          %s1247 = scalar_lea.sflag [#allocation4], %s1246
          %s1248 = sand.u32 %s101, 1
          %s1249 = smul.addr %s1248, 64
          %s1250 = scalar_lea.vmem [#allocation7], %s1249
          %1251 = dma.done %s1247, 1024
        $region52: #{tpu_custom_call.1} parent=47 // pred_fallthru
          _
      $region48: #{tpu_custom_call.1} parent=5 // pred_fallthru
        _
    $region6: #{tpu_custom_call.1} parent=1 // loop_footer
      %s19 = sadd.s32 1, %s15
    $region7: #{tpu_custom_call.1} parent=1 // loop_footer_branch
      %14 = sbr.rel target = $region3
    $region8: #{tpu_custom_call.1} parent=1 // loop_exit
      _
    %1252 = vsyncpa [#allocation3], 1
    %s1253 = scalar_lea.sflag [#allocation3], 1
    %1254 = vsyncpa %s1253, 1
    %1255 = vsyncpa [#allocation6], 1
    %s1256 = scalar_lea.sflag [#allocation6], 1
    %1257 = vsyncpa %s1256, 1
    %1258 = vsyncpa [#allocation4], 1
    %s1259 = scalar_lea.sflag [#allocation4], 1
    %1260 = vsyncpa %s1259, 1

</llo_original>
